<compile_context>
chip_gen: v7x
topology: tpu7x:2x2x1
jax: 0.10.0
libtpu: 0.0.40
codegen_flags: <defaults>
</compile_context>

<pallas_src>
import jax
import jax.numpy as jnp
from jax.experimental import pallas as pl
from jax.experimental.pallas import tpu as pltpu


# ----------------------------- fused kernel ---------------------------------


def _fused_head_kernel(x_ref, w_ref, b_ref, seg_ref, act_ref, distr_ref):
    # Linear head on the MXU: bf16 inputs, f32 accumulation.
    act = jnp.dot(x_ref[...], w_ref[...], preferred_element_type=jnp.float32)
    act = act + b_ref[...]                        # (tm, A*NB) f32, lane-dense
    act_ref[...] = act.astype(act_ref.dtype)      # bf16 store (v5e vst relief)

    # Segmented softmax over groups of `num_bins` contiguous lanes, kept fully
    # lane-dense (no reshape -> no lane->sublane relayout):
    #  - stabilizer: per-row max (cross-lane reduce).  Mathematically identical
    #    to the per-group max; only deviates if a whole group sits ~80+ below
    #    the row max (exp underflow), guarded below.
    #  - per-group sums broadcast to every lane via one small MXU matmul with a
    #    block-diagonal 0/1 segment matrix.
    row_max = jnp.max(act, axis=-1, keepdims=True)            # (tm, 1)
    e = jnp.exp(act - row_max)                                 # full-lane EUP exp
    denom = jnp.dot(e, seg_ref[...], preferred_element_type=jnp.float32)
    denom = jnp.maximum(denom, 1e-30)                          # underflow guard
    distr_ref[...] = (e / denom).astype(distr_ref.dtype)      # exact divide


# ----------------------------- wrapper ---------------------------------------


def distribution_per_node_forward(x, w, b, full_logit_priors, num_bins):
    """Reproduces DistributionPerNodeRuleTransformParent.forward.

    x may carry arbitrary leading (batch, node, ...) dims; they are folded into
    one row axis so a single pallas_call covers every node.
    Returns a dict with 'action', 'action_distrs', 'used_priors',
    'masked_policy_logits'.
    """
    d_in = x.shape[-1]
    out_dim = w.shape[1]
    assert out_dim % num_bins == 0
    num_actions = out_dim // num_bins

    x2 = x.reshape(-1, d_in)                 # fold batch*nodes into rows
    rows = x2.shape[0]

    # Row tile: multiple of 16 (bf16 sublane tile) when possible, and a grid
    # with >1 step so pipelining / v7x megacore sharding have work to split.
    if rows % 16 == 0 and rows > 16:
        tm = 16
    elif rows % 8 == 0 and rows > 8:
        tm = 8
    else:
        tm = rows
    grid = (rows // tm,)

    # Block-diagonal segment matrix: seg[i, j] = 1 iff lanes i and j belong to
    # the same num_bins-wide group (used to broadcast per-group sums).
    gid = jnp.arange(out_dim, dtype=jnp.int32) // num_bins
    seg = (gid[:, None] == gid[None, :]).astype(jnp.float32)

    b2 = b.reshape(1, out_dim).astype(jnp.float32)
    act_dtype = x.dtype                       # model dtype (bf16 in the demo)

    action_flat, distrs_flat = pl.pallas_call(
        _fused_head_kernel,
        out_shape=(
            jax.ShapeDtypeStruct((rows, out_dim), act_dtype),
            jax.ShapeDtypeStruct((rows, out_dim), jnp.float32),
        ),
        grid=grid,
        in_specs=[
            pl.BlockSpec((tm, d_in), lambda i: (i, 0)),          # x rows
            pl.BlockSpec((d_in, out_dim), lambda i: (0, 0)),     # W (resident)
            pl.BlockSpec((1, out_dim), lambda i: (0, 0)),        # bias
            pl.BlockSpec((out_dim, out_dim), lambda i: (0, 0)),  # segment matrix
        ],
        out_specs=(
            pl.BlockSpec((tm, out_dim), lambda i: (i, 0)),
            pl.BlockSpec((tm, out_dim), lambda i: (i, 0)),
        ),
        compiler_params=pltpu.CompilerParams(
            dimension_semantics=("parallel",),   # rows split across v7x cores
        ),
    )(x2, w, b2, seg)

    # numpy_priors_to_mask: flatten priors and cast to the action dtype
    # (wrapper-side view + cast, zero kernel work).
    used_priors = full_logit_priors.reshape(rows, -1).astype(act_dtype)

    # TODO(synk): action_distrs_to_action_prob_logits raises NotImplementedError
    # in the parent class; its contribution is taken as zero, so
    # masked_policy_logits == 0 + used_priors (no kernel / no DMA needed).
    masked_policy_logits = used_priors

    return {
        "action": action_flat.reshape(rows, num_actions, num_bins),
        "action_distrs": distrs_flat.reshape(rows, num_actions, num_bins),
        "used_priors": used_priors,
        "masked_policy_logits": masked_policy_logits,
    }


# ----------------------------- reference -------------------------------------


def _reference(x, w, b, full_logit_priors, num_bins):
    d_in = x.shape[-1]
    x2 = x.reshape(-1, d_in).astype(jnp.float32)
    rows = x2.shape[0]
    logits = x2 @ w.astype(jnp.float32) + b.astype(jnp.float32)
    a3 = logits.reshape(rows, -1, num_bins)
    distrs = jax.nn.softmax(a3, axis=-1)
    used = full_logit_priors.reshape(rows, -1).astype(x.dtype)
    return a3, distrs, used, used


# ----------------------------- main -------------------------------------------


if __name__ == "__main__":
    key = jax.random.PRNGKey(0)
    k1, k2, k3, k4, k5 = jax.random.split(key, 5)

    batch, nodes, d_in = 2, 16, 32        # batch*nodes = 32 rows (2 grid steps)
    num_actions, num_bins = 16, 8
    out_dim = num_actions * num_bins      # 128 -> lane-dense outputs

    # Native bf16 activations / weights feed the MXU directly (f32 accumulate).
    x = jax.random.normal(k1, (batch, nodes, d_in)).astype(jnp.bfloat16)
    w = (jax.random.normal(k2, (d_in, out_dim)) * 0.1).astype(jnp.bfloat16)
    b = jax.random.normal(k3, (out_dim,), dtype=jnp.float32) * 0.01
    priors = jax.random.normal(
        k4, (batch, nodes, num_actions, num_bins), dtype=jnp.float32)
    mask = jax.random.bernoulli(k5, 0.3, (batch, nodes, num_actions, num_bins))
    full_logit_priors = jnp.where(mask, -1e4, priors)

    out = distribution_per_node_forward(x, w, b, full_logit_priors, num_bins)
    jax.block_until_ready(out)

    ref_action, ref_distrs, ref_priors, ref_masked = _reference(
        x, w, b, full_logit_priors, num_bins)

    # 'action' is stored in bf16 -> tolerance covers the bf16 rounding.
    assert jnp.allclose(out["action"].astype(jnp.float32), ref_action,
                        atol=1e-2, rtol=1e-2), "action mismatch"
    assert jnp.allclose(out["action_distrs"], ref_distrs,
                        atol=5e-3, rtol=1e-2), "action_distrs mismatch"
    assert jnp.allclose(out["used_priors"].astype(jnp.float32),
                        ref_priors.astype(jnp.float32)), "used_priors mismatch"
    assert jnp.allclose(out["masked_policy_logits"].astype(jnp.float32),
                        ref_masked.astype(jnp.float32)), "masked_policy_logits mismatch"

    print("KERNEL_OK")
</pallas_src>

<mosaic_0001>
module attributes {stable_mosaic.version = 11 : i64} {
  func.func @_fused_head_kernel(%arg0: i32, %arg1: memref<16x32xbf16, #tpu.memory_space<vmem>>, %arg2: memref<32x128xbf16, #tpu.memory_space<vmem>>, %arg3: memref<1x128xf32, #tpu.memory_space<vmem>>, %arg4: memref<128x128xf32, #tpu.memory_space<vmem>>, %arg5: memref<16x128xbf16, #tpu.memory_space<vmem>>, %arg6: memref<16x128xf32, #tpu.memory_space<vmem>>) attributes {dimension_semantics = [#tpu.dimension_semantics<parallel>], iteration_bounds = array<i64: 2>, scalar_prefetch = 0 : i64, scratch_operands = 0 : i64, tpu.core_type = #tpu.core_type<tc>, window_params = [{transform_indices = @transform_0, window_bounds = array<i64: 16, 32>}, {pipeline_mode = #tpu.pipeline_mode<synchronous>, transform_indices = @transform_1, window_bounds = array<i64: 32, 128>}, {pipeline_mode = #tpu.pipeline_mode<synchronous>, transform_indices = @transform_2, window_bounds = array<i64: 1, 128>}, {pipeline_mode = #tpu.pipeline_mode<synchronous>, transform_indices = @transform_3, window_bounds = array<i64: 128, 128>}, {transform_indices = @transform_4, window_bounds = array<i64: 16, 128>}, {transform_indices = @transform_5, window_bounds = array<i64: 16, 128>}]} {
    %c0 = arith.constant 0 : index
    %c0_0 = arith.constant 0 : index
    %0 = vector.load %arg1[%c0, %c0_0] : memref<16x32xbf16, #tpu.memory_space<vmem>>, vector<16x32xbf16>
    %c0_1 = arith.constant 0 : index
    %c0_2 = arith.constant 0 : index
    %1 = vector.load %arg2[%c0_1, %c0_2] : memref<32x128xbf16, #tpu.memory_space<vmem>>, vector<32x128xbf16>
    %cst = arith.constant dense<0.000000e+00> : vector<16x128xf32>
    %2 = tpu.matmul %0, %1, %cst {dimension_numbers = #tpu.dot_dimension_numbers<[1], [0], [0], [1], [0, 0, 1, 1], [], []>} : vector<16x32xbf16>, vector<32x128xbf16>, vector<16x128xf32> -> vector<16x128xf32>
    %c0_3 = arith.constant 0 : index
    %c0_4 = arith.constant 0 : index
    %3 = vector.load %arg3[%c0_3, %c0_4] : memref<1x128xf32, #tpu.memory_space<vmem>>, vector<1x128xf32>
    %4 = vector.broadcast %3 : vector<1x128xf32> to vector<16x128xf32>
    %5 = arith.addf %2, %4 : vector<16x128xf32>
    %6 = arith.truncf %5 : vector<16x128xf32> to vector<16x128xbf16>
    %c0_5 = arith.constant 0 : index
    %c0_6 = arith.constant 0 : index
    %7 = vector.load %arg5[%c0_5, %c0_6] : memref<16x128xbf16, #tpu.memory_space<vmem>>, vector<16x128xbf16>
    tpu.vector_store %arg5[%c0_5, %c0_6], %6 {strides = array<i32>} : memref<16x128xbf16, #tpu.memory_space<vmem>>, vector<16x128xbf16>,
    %cst_7 = arith.constant dense<0xFF800000> : vector<16xf32>
    %8 = vector.multi_reduction <maximumf>, %5, %cst_7 [1] : vector<16x128xf32> to vector<16xf32>
    %9 = vector.shape_cast %8 : vector<16xf32> to vector<16x1xf32>
    %10 = vector.broadcast %9 : vector<16x1xf32> to vector<16x128xf32>
    %11 = arith.subf %5, %10 : vector<16x128xf32>
    %12 = math.exp %11 : vector<16x128xf32>
    %c0_8 = arith.constant 0 : index
    %c0_9 = arith.constant 0 : index
    %13 = vector.load %arg4[%c0_8, %c0_9] : memref<128x128xf32, #tpu.memory_space<vmem>>, vector<128x128xf32>
    %cst_10 = arith.constant dense<0.000000e+00> : vector<16x128xf32>
    %14 = tpu.matmul %12, %13, %cst_10 {dimension_numbers = #tpu.dot_dimension_numbers<[1], [0], [0], [1], [0, 0, 1, 1], [], []>} : vector<16x128xf32>, vector<128x128xf32>, vector<16x128xf32> -> vector<16x128xf32>
    %cst_11 = arith.constant 1.000000e-30 : f32
    %15 = vector.broadcast %cst_11 : f32 to vector<16x128xf32>
    %16 = arith.maximumf %14, %15 : vector<16x128xf32>
    %17 = arith.divf %12, %16 : vector<16x128xf32>
    %c0_12 = arith.constant 0 : index
    %c0_13 = arith.constant 0 : index
    %18 = vector.load %arg6[%c0_12, %c0_13] : memref<16x128xf32, #tpu.memory_space<vmem>>, vector<16x128xf32>
    tpu.vector_store %arg6[%c0_12, %c0_13], %17 {strides = array<i32>} : memref<16x128xf32, #tpu.memory_space<vmem>>, vector<16x128xf32>,
    return
  }
  func.func @transform_0(%arg0: i32) -> (i32, i32) {
    %c0_i32 = arith.constant 0 : i32
    %c0_i32_0 = arith.constant 0 : i32
    return %arg0, %c0_i32 : i32, i32
  }
  func.func @transform_1(%arg0: i32) -> (i32, i32) {
    %c0_i32 = arith.constant 0 : i32
    %c0_i32_0 = arith.constant 0 : i32
    %c0_i32_1 = arith.constant 0 : i32
    return %c0_i32, %c0_i32_0 : i32, i32
  }
  func.func @transform_2(%arg0: i32) -> (i32, i32) {
    %c0_i32 = arith.constant 0 : i32
    %c0_i32_0 = arith.constant 0 : i32
    %c0_i32_1 = arith.constant 0 : i32
    return %c0_i32, %c0_i32_0 : i32, i32
  }
  func.func @transform_3(%arg0: i32) -> (i32, i32) {
    %c0_i32 = arith.constant 0 : i32
    %c0_i32_0 = arith.constant 0 : i32
    %c0_i32_1 = arith.constant 0 : i32
    return %c0_i32, %c0_i32_0 : i32, i32
  }
  func.func @transform_4(%arg0: i32) -> (i32, i32) {
    %c0_i32 = arith.constant 0 : i32
    %c0_i32_0 = arith.constant 0 : i32
    return %arg0, %c0_i32 : i32, i32
  }
  func.func @transform_5(%arg0: i32) -> (i32, i32) {
    %c0_i32 = arith.constant 0 : i32
    %c0_i32_0 = arith.constant 0 : i32
    return %arg0, %c0_i32 : i32, i32
  }
}

</mosaic_0001>

<llo_original>
// kernel: tpu_custom_call.1
$region0: #{tpu_custom_call.1}
  #allocation0 [shape = 'u32[]', space=smem, size = 0x4, offset = 0x4, fixed_abs, tag = 'smem constant byte address 0x4 - core index']
  #allocation1 [shape = 'u32[144,128]{1,0:T(1,128)}', space=vmem, size = 0x12000, scoped, tag = 'internal scratch']
  %s0 = inlined_call_operand.hbm [shape: bf16[32,32], index: 0, kind: input, shape index: {}]
  %s1 = inlined_call_operand.hbm [shape: bf16[32,128], index: 1, kind: input, shape index: {}]
  %s2 = inlined_call_operand.vmem [shape: f32[1,128], index: 2, kind: input, shape index: {}]
  %s3 = inlined_call_operand.hbm [shape: f32[128,128], index: 3, kind: input, shape index: {}]
  %s4 = inlined_call_operand.hbm [shape: bf16[32,128], index: 4, kind: output, shape index: {0}]
  %s5 = inlined_call_operand.hbm [shape: f32[32,128], index: 5, kind: output, shape index: {1}]
  %6 = xla_tuple %s4, %s5
  %s7 = sld [smem:[#allocation0]]
  $region69: #{tpu_custom_call.1} parent=0
    _
  %s9 = ssub.s32 1, %s7
  %s10 = scalar_select 0, %s9, %s7
  $region1: #{tpu_custom_call.1} parent=0
    #allocation2 [shape = 'u8[8192]{0}', space=vmem, size = 0x2000, scoped, tag = 'input window, operand 0']
    #allocation3 [shape = 's32[2]{0}', space=sflag, size = 0x8, scoped, tag = 'scoped memory for tpu_custom_call.1']
    #allocation4 [shape = 's32[2]{0}', space=sflag, size = 0x8, scoped, tag = 'scoped memory for tpu_custom_call.1']
    #allocation5 [shape = 'u8[8192]{0}', space=vmem, size = 0x2000, scoped, tag = 'input window, operand 1, single buffered']
    #allocation6 [shape = 's32[1]{0}', space=sflag, size = 0x4, scoped, tag = 'scoped memory for tpu_custom_call.1']
    #allocation7 [shape = 'u8[65536]{0}', space=vmem, size = 0x10000, scoped, tag = 'input window, operand 3, single buffered']
    #allocation8 [shape = 'u8[8192]{0}', space=vmem, size = 0x2000, scoped, tag = 'output window, operand 0']
    #allocation9 [shape = 'u8[16384]{0}', space=vmem, size = 0x4000, scoped, tag = 'output window, operand 1']
    #allocation10 [shape = 's32[2]{0}', space=sflag, size = 0x8, scoped, tag = 'scoped memory for tpu_custom_call.1']
    %11 = vsyncpa [#allocation3], 0
    %s12 = scalar_lea.sflag [#allocation3], 1
    %13 = vsyncpa %s12, 0
    %14 = vsyncpa [#allocation6], 0
    %15 = vsyncpa [#allocation4], 0
    %s16 = scalar_lea.sflag [#allocation4], 1
    %17 = vsyncpa %s16, 0
    %18 = vsyncpa [#allocation10], 0
    %s19 = scalar_lea.sflag [#allocation10], 1
    %20 = vsyncpa %s19, 0
    loop: start=0, step=1, limit=4
    $region2: #{tpu_custom_call.1} parent=1 // loop_pre_header
      _
    $region3: #{tpu_custom_call.1} parent=1 // loop_header
      %s22 = sphi 0, %s26
      %p23 = scmp.ge.s32.totalorder %s22, 4
      %s32 = sphi 0, %s34
      %s35 = sphi 0, %s32
      %s36 = sphi 0, %s35
      %s52 = sphi 0, %s36
      %s56 = sphi 0, %s56
      %s58 = sphi 0, %s56
      %s59 = sphi 0, %s58
      %s73 = sphi 0, %s59
      %s77 = sphi 0, %s77
      %s79 = sphi 0, %s77
      %s80 = sphi 0, %s79
      %s94 = sphi 0, %s80
      %s98 = sphi 0, %s98
      %s100 = sphi 0, %s98
      %s101 = sphi 0, %s100
      %s115 = sphi 0, %s101
      %s121 = sphi 0, %s123
      %s124 = sphi 0, %s121
      %s125 = sphi 0, %s124
      %s141 = sphi 0, %s125
      %s147 = sphi 0, %s149
      %s150 = sphi 0, %s147
      %s151 = sphi 0, %s150
      %s167 = sphi 0, %s151
    $region4: #{tpu_custom_call.1} parent=1 // loop_header_branch
      %25 = sbr.rel (%p23) target = $region8
    $region5: #{tpu_custom_call.1} parent=1 // loop_body
      %s27 = ssub.s32 %s22, 1
      %s28 = ssub.s32 %s22, 2
      %s29 = sadd.s32 %s22, 1
      %s30 = ssub.s32 %s22, %s29
      %p31 = scmp.eq.s32.totalorder %s30, 0
      %s33 = sadd.s32 %s32, 1
      %s34 = scalar_select %p31, %s32, %s33
      %p37 = pneg %p31
      %p38 = scmp.eq.s32.totalorder %s22, 1
      %p39 = por %p37, %p38
      %p40 = scmp.ne.s32.totalorder %s32, %s35
      %p41 = scmp.eq.s32.totalorder %s22, 0
      %p42 = por %p40, %p41
      %p43 = scmp.ne.s32.totalorder %s32, %s35
      %p44 = scmp.eq.s32.totalorder %s27, 1
      %p45 = por %p43, %p44
      %p46 = scmp.ne.s32.totalorder %s35, %s36
      %p47 = scmp.eq.s32.totalorder %s27, 0
      %p48 = por %p46, %p47
      %p49 = scmp.ne.s32.totalorder %s35, %s36
      %p50 = scmp.eq.s32.totalorder %s28, 1
      %p51 = por %p49, %p50
      %p53 = scmp.ne.s32.totalorder %s36, %s52
      %p54 = scmp.eq.s32.totalorder %s28, 0
      %p55 = por %p53, %p54
      %s57 = sadd.s32 %s56, 1
      %p60 = scmp.eq.s32.totalorder %s22, 1
      %p61 = scmp.ne.s32.totalorder %s56, %s58
      %p62 = scmp.eq.s32.totalorder %s22, 0
      %p63 = por %p61, %p62
      %p64 = scmp.ne.s32.totalorder %s56, %s58
      %p65 = scmp.eq.s32.totalorder %s27, 1
      %p66 = por %p64, %p65
      %p67 = scmp.ne.s32.totalorder %s58, %s59
      %p68 = scmp.eq.s32.totalorder %s27, 0
      %p69 = por %p67, %p68
      %p70 = scmp.ne.s32.totalorder %s58, %s59
      %p71 = scmp.eq.s32.totalorder %s28, 1
      %p72 = por %p70, %p71
      %p74 = scmp.ne.s32.totalorder %s59, %s73
      %p75 = scmp.eq.s32.totalorder %s28, 0
      %p76 = por %p74, %p75
      %s78 = sadd.s32 %s77, 1
      %p81 = scmp.eq.s32.totalorder %s22, 1
      %p82 = scmp.ne.s32.totalorder %s77, %s79
      %p83 = scmp.eq.s32.totalorder %s22, 0
      %p84 = por %p82, %p83
      %p85 = scmp.ne.s32.totalorder %s77, %s79
      %p86 = scmp.eq.s32.totalorder %s27, 1
      %p87 = por %p85, %p86
      %p88 = scmp.ne.s32.totalorder %s79, %s80
      %p89 = scmp.eq.s32.totalorder %s27, 0
      %p90 = por %p88, %p89
      %p91 = scmp.ne.s32.totalorder %s79, %s80
      %p92 = scmp.eq.s32.totalorder %s28, 1
      %p93 = por %p91, %p92
      %p95 = scmp.ne.s32.totalorder %s80, %s94
      %p96 = scmp.eq.s32.totalorder %s28, 0
      %p97 = por %p95, %p96
      %s99 = sadd.s32 %s98, 1
      %p102 = scmp.eq.s32.totalorder %s22, 1
      %p103 = scmp.ne.s32.totalorder %s98, %s100
      %p104 = scmp.eq.s32.totalorder %s22, 0
      %p105 = por %p103, %p104
      %p106 = scmp.ne.s32.totalorder %s98, %s100
      %p107 = scmp.eq.s32.totalorder %s27, 1
      %p108 = por %p106, %p107
      %p109 = scmp.ne.s32.totalorder %s100, %s101
      %p110 = scmp.eq.s32.totalorder %s27, 0
      %p111 = por %p109, %p110
      %p112 = scmp.ne.s32.totalorder %s100, %s101
      %p113 = scmp.eq.s32.totalorder %s28, 1
      %p114 = por %p112, %p113
      %p116 = scmp.ne.s32.totalorder %s101, %s115
      %p117 = scmp.eq.s32.totalorder %s28, 0
      %p118 = por %p116, %p117
      %s119 = ssub.s32 %s22, %s29
      %p120 = scmp.eq.s32.totalorder %s119, 0
      %s122 = sadd.s32 %s121, 1
      %s123 = scalar_select %p120, %s121, %s122
      %p126 = pneg %p120
      %p127 = scmp.eq.s32.totalorder %s22, 1
      %p128 = por %p126, %p127
      %p129 = scmp.ne.s32.totalorder %s121, %s124
      %p130 = scmp.eq.s32.totalorder %s22, 0
      %p131 = por %p129, %p130
      %p132 = scmp.ne.s32.totalorder %s121, %s124
      %p133 = scmp.eq.s32.totalorder %s27, 1
      %p134 = por %p132, %p133
      %p135 = scmp.ne.s32.totalorder %s124, %s125
      %p136 = scmp.eq.s32.totalorder %s27, 0
      %p137 = por %p135, %p136
      %p138 = scmp.ne.s32.totalorder %s124, %s125
      %p139 = scmp.eq.s32.totalorder %s28, 1
      %p140 = por %p138, %p139
      %p142 = scmp.ne.s32.totalorder %s125, %s141
      %p143 = scmp.eq.s32.totalorder %s28, 0
      %p144 = por %p142, %p143
      %s145 = ssub.s32 %s22, %s29
      %p146 = scmp.eq.s32.totalorder %s145, 0
      %s148 = sadd.s32 %s147, 1
      %s149 = scalar_select %p146, %s147, %s148
      %p152 = pneg %p146
      %p153 = scmp.eq.s32.totalorder %s22, 1
      %p154 = por %p152, %p153
      %p155 = scmp.ne.s32.totalorder %s147, %s150
      %p156 = scmp.eq.s32.totalorder %s22, 0
      %p157 = por %p155, %p156
      %p158 = scmp.ne.s32.totalorder %s147, %s150
      %p159 = scmp.eq.s32.totalorder %s27, 1
      %p160 = por %p158, %p159
      %p161 = scmp.ne.s32.totalorder %s150, %s151
      %p162 = scmp.eq.s32.totalorder %s27, 0
      %p163 = por %p161, %p162
      %p164 = scmp.ne.s32.totalorder %s150, %s151
      %p165 = scmp.eq.s32.totalorder %s28, 1
      %p166 = por %p164, %p165
      %p168 = scmp.ne.s32.totalorder %s151, %s167
      %p169 = scmp.eq.s32.totalorder %s28, 0
      %p170 = por %p168, %p169
      %p171 = scmp.le.s32.totalorder 1, %s22
      %p172 = scmp.lt.s32.totalorder %s22, 3
      %p173 = pnand %p171, %p172
      %p174 = pneg %p173
      // Predicated region
      $region9: #{tpu_custom_call.1} parent=5 // pred_check
        _
      $region10: #{tpu_custom_call.1} parent=5 // pred_check_branch
        %176 = sbr.rel (%p173) target = $region12
      $region11: #{tpu_custom_call.1} parent=5 // pred_region
        %s177 = ssub.s32 %s22, 1
        // Predicated region
        $region13: #{tpu_custom_call.1} parent=11 // pred_check
          %p178 = pneg %p69
        $region14: #{tpu_custom_call.1} parent=11 // pred_check_branch
          %180 = sbr.rel (%p178) target = $region16
        $region15: #{tpu_custom_call.1} parent=11 // pred_region
          %s182 = ssub.s32 256, 256
          %183 = vsyncadd [#allocation6], %s182
          %s184 = sshll.u32 [#allocation5], 4
          %s185 = int_to_ptr.vmem [resolvable:$true] %s184
          %190 = dma.hbm_to_vmem [thread:$0]  %s1, 256, %s185, [#allocation6], 64, 64, 4
        $region16: #{tpu_custom_call.1} parent=11 // pred_fallthru
          _
        // Predicated region
        $region17: #{tpu_custom_call.1} parent=11 // pred_check
          %p191 = pneg %p90
        $region18: #{tpu_custom_call.1} parent=11 // pred_check_branch
          %193 = sbr.rel (%p191) target = $region20
        $region19: #{tpu_custom_call.1} parent=11 // pred_region
          _
        $region20: #{tpu_custom_call.1} parent=11 // pred_fallthru
          _
        // Predicated region
        $region21: #{tpu_custom_call.1} parent=11 // pred_check
          %p194 = pneg %p111
        $region22: #{tpu_custom_call.1} parent=11 // pred_check_branch
          %196 = sbr.rel (%p194) target = $region24
        $region23: #{tpu_custom_call.1} parent=11 // pred_region
          %s198 = ssub.s32 2048, 2048
          %199 = vsyncadd [#allocation6], %s198
          %s200 = sshll.u32 [#allocation7], 4
          %s201 = int_to_ptr.vmem [resolvable:$true] %s200
          %206 = dma.hbm_to_vmem [thread:$0]  %s3, 2048, %s201, [#allocation6], 128, 128, 8
        $region24: #{tpu_custom_call.1} parent=11 // pred_fallthru
          _
      $region12: #{tpu_custom_call.1} parent=5 // pred_fallthru
        _
      %p207 = scmp.lt.s32.totalorder %s22, 2
      // Predicated region
      $region25: #{tpu_custom_call.1} parent=5 // pred_check
        %p208 = pneg %p207
      $region26: #{tpu_custom_call.1} parent=5 // pred_check_branch
        %210 = sbr.rel (%p208) target = $region28
      $region27: #{tpu_custom_call.1} parent=5 // pred_region
        // Predicated region
        $region29: #{tpu_custom_call.1} parent=27 // pred_check
          %p211 = pneg %p42
        $region30: #{tpu_custom_call.1} parent=27 // pred_check_branch
          %213 = sbr.rel (%p211) target = $region32
        $region31: #{tpu_custom_call.1} parent=27 // pred_region
          %s214 = sand.u32 %s32, 1
          %s215 = scalar_lea.sflag [#allocation3], %s214
          %s216 = sand.u32 %s32, 1
          %s217 = smul.addr %s216, 8
          %s218 = scalar_lea.vmem [#allocation2], %s217
          %s219 = smul.u32 2, %s22
          %s221 = ssub.s32 128, 128
          %222 = vsyncadd %s215, %s221
          %s223 = smul.addr %s219, 64
          %s224 = scalar_lea.hbm %s0, %s223
          %s225 = sshll.u32 %s218, 4
          %s226 = int_to_ptr.vmem [resolvable:$true] %s225
          %231 = dma.hbm_to_vmem [thread:$0]  %s224, 128, %s226, %s215, 64, 64, 4
        $region32: #{tpu_custom_call.1} parent=27 // pred_fallthru
          _
      $region28: #{tpu_custom_call.1} parent=5 // pred_fallthru
        _
      %p232 = scmp.le.s32.totalorder 1, %s22
      %p233 = scmp.lt.s32.totalorder %s22, 3
      %p234 = pnand %p232, %p233
      %p235 = pneg %p234
      // Predicated region
      $region33: #{tpu_custom_call.1} parent=5 // pred_check
        _
      $region34: #{tpu_custom_call.1} parent=5 // pred_check_branch
        %237 = sbr.rel (%p234) target = $region36
      $region35: #{tpu_custom_call.1} parent=5 // pred_region
        %s238 = ssub.s32 %s22, 1
        %s239 = sand.u32 %s35, 1
        %s240 = scalar_lea.sflag [#allocation3], %s239
        %s241 = sand.u32 %s35, 1
        %s242 = smul.addr %s241, 8
        %s243 = scalar_lea.vmem [#allocation2], %s242
        // Predicated region
        $region37: #{tpu_custom_call.1} parent=35 // pred_check
          %p244 = pneg %p48
        $region38: #{tpu_custom_call.1} parent=35 // pred_check_branch
          %246 = sbr.rel (%p244) target = $region40
        $region39: #{tpu_custom_call.1} parent=35 // pred_region
          %247 = dma.done %s240, 128
        $region40: #{tpu_custom_call.1} parent=35 // pred_fallthru
          _
        // Predicated region
        $region41: #{tpu_custom_call.1} parent=35 // pred_check
          %p248 = pneg %p69
        $region42: #{tpu_custom_call.1} parent=35 // pred_check_branch
          %250 = sbr.rel (%p248) target = $region44
        $region43: #{tpu_custom_call.1} parent=35 // pred_region
          %251 = dma.done [#allocation6], 256
        $region44: #{tpu_custom_call.1} parent=35 // pred_fallthru
          _
        // Predicated region
        $region45: #{tpu_custom_call.1} parent=35 // pred_check
          %p252 = pneg %p111
        $region46: #{tpu_custom_call.1} parent=35 // pred_check_branch
          %254 = sbr.rel (%p252) target = $region48
        $region47: #{tpu_custom_call.1} parent=35 // pred_region
          %255 = dma.done [#allocation6], 2048
        $region48: #{tpu_custom_call.1} parent=35 // pred_fallthru
          _
        %s256 = sand.u32 %s35, 1
        %s257 = scalar_lea.sflag [#allocation3], %s256
        %s258 = sand.u32 %s35, 1
        %s259 = smul.addr %s258, 8
        %s260 = scalar_lea.vmem [#allocation2], %s259
        %p261 = pneg %p48
        %p262 = pneg %p45
        %p263 = pneg %p69
        %p264 = pneg %p66
        %p265 = pneg %p90
        %p266 = pneg %p87
        %p267 = pneg %p111
        %p268 = pneg %p108
        %p269 = pneg %p137
        %p270 = pneg %p134
        %s271 = sand.u32 %s124, 1
        %s272 = scalar_lea.sflag [#allocation4], %s271
        %s273 = sand.u32 %s124, 1
        %s274 = smul.addr %s273, 8
        %s275 = scalar_lea.vmem [#allocation8], %s274
        %p276 = pneg %p163
        %p277 = pneg %p160
        %s278 = sand.u32 %s150, 1
        %s279 = scalar_lea.sflag [#allocation10], %s278
        %s280 = sand.u32 %s150, 1
        %s281 = smul.addr %s280, 16
        %s282 = scalar_lea.vmem [#allocation9], %s281
        %s283 = smul.u32 2, %s27
        %s284 = smul.u32 2, %s27
        %s285 = smul.u32 2, %s27
        %v287 = vld [vmem:[%s243] sm:$0xf]
        %v288 = vld [vmem:[%s243 + $0x4] sm:$0xf]
        %v289 = vld [vmem:[#allocation5] sm:$0xf]
        %v290 = vld [vmem:[#allocation5 + $0x4] sm:$0xf]
        %v291 = vld [vmem:[#allocation5 + $0x8] sm:$0xf]
        %v292 = vld [vmem:[#allocation5 + $0xc] sm:$0xf]
        %v293 = vld [vmem:[%s2] sm:$0x1]
        %v295 = vlaneseq
        %v296 = vshrl.u32 %v295, 7
        %v297 = vsub.s32 0, %v296
        %v298 = vrot.slane %v293, %v297
        %v302 = vunpack.c.l.b16 %v287
        %v303 = vunpack.c.l.b16 %v288
        %v304 = vpack.c.b16 %v303, %v302
        %v309 = vunpack.c.l.b16 %v289
        %v310 = vunpack.c.l.b16 %v290
        %v311 = vunpack.c.l.b16 %v291
        %v312 = vunpack.c.l.b16 %v292
        %v313 = vpack.c.b16 %v310, %v309
        %v314 = vpack.c.b16 %v312, %v311
        %vm317 = vcmask 261120
        %v319 = vsel %vm317, %v304, 0
        %321 = vmatprep.subr.bf16.mxu0 0
        %322 = vmatpush1.bf16.msra.mxu0 %v313
        %323 = vmatprep.subr.bf16.mxu0 0
        %324 = vmatpush1.bf16.msra.mxu0 %v314
        %325 = vmatprep.subr.bf16.mxu0 0
        %326 = vmatpush1.bf16.msra.mxu0 0
        %327 = vmatprep.subr.bf16.mxu0 0
        %328 = vmatpush1.bf16.msra.mxu0 0
        %329 = vmatprep.subr.bf16.mxu0 0
        %330 = vmatpush1.bf16.msra.mxu0 0
        %331 = vmatprep.subr.bf16.mxu0 0
        %332 = vmatpush1.bf16.msra.mxu0 0
        %333 = vmatprep.subr.bf16.mxu0 0
        %334 = vmatpush1.bf16.msra.mxu0 0
        %335 = vmatprep.subr.bf16.mxu0 0
        %336 = vmatpush1.bf16.msra.mxu0 0
        %337 = vmatprep.subr.bf16.mxu0 0
        %338 = vmatpush1.bf16.msra.mxu0 0
        %339 = vmatprep.subr.bf16.mxu0 0
        %340 = vmatpush1.bf16.msra.mxu0 0
        %341 = vmatprep.subr.bf16.mxu0 0
        %342 = vmatpush1.bf16.msra.mxu0 0
        %343 = vmatprep.subr.bf16.mxu0 0
        %344 = vmatpush1.bf16.msra.mxu0 0
        %345 = vmatprep.subr.bf16.mxu0 0
        %346 = vmatpush1.bf16.msra.mxu0 0
        %347 = vmatprep.subr.bf16.mxu0 0
        %348 = vmatpush1.bf16.msra.mxu0 0
        %349 = vmatprep.subr.bf16.mxu0 0
        %350 = vmatpush1.bf16.msra.mxu0 0
        %351 = vmatprep.subr.bf16.mxu0 0
        %352 = vmatpush1.bf16.msra.mxu0 0
        %353 = vmatprep.mubr.bf16.mxu0 0
        %354 = vmatmul.mubr.bf16.gmra.mrb[0].mxu0 %v319
        %v355 = vpop.f32.mrb[0].mxu0
        %v356 = vadd.f32 %v298, %v355
        %v357 = vpop.f32.mrb[0].mxu0
        %v358 = vpop.f32.mrb[0].mxu0
        %v359 = vadd.f32 %v298, %v358
        %v360 = vpop.f32.mrb[0].mxu0
        %361 = vdwg.mxu0
        %v362 = vpack.c.bf16 %v359, %v356
        %v364 = vunpack.c.l.b16 %v362
        %v365 = vunpack.c.h.b16 %v362
        %v366 = vpack.c.b16 %v364, %v364
        %v367 = vpack.c.b16 %v365, %v365
        %370 = vst [vmem:[%s275] sm:$0xf] %v366
        %371 = vst [vmem:[%s275 + $0x4] sm:$0xf] %v367
        %372 = vmax.xlane.f32.xlu0 %v356
        %v373 = vpop.xlane.xlu0 %372
        %374 = vmax.xlane.f32.xlu0 %v359
        %v375 = vpop.xlane.xlu0 %374
        %v376 = vsub.f32 %v356, %v373
        %v377 = vsub.f32 %v359, %v375
        %v378 = vmul.f32 %v376, 1.442695
        %v379 = vpow.pop %v378
        %v380 = vmul.f32 %v377, 1.442695
        %v381 = vpow.pop %v380
        %v382 = vld [vmem:[#allocation7] sm:$0xff]
        %v383 = vld [vmem:[#allocation7 + $0x8] sm:$0xff]
        %v384 = vld [vmem:[#allocation7 + $0x10] sm:$0xff]
        %v385 = vld [vmem:[#allocation7 + $0x18] sm:$0xff]
        %v386 = vld [vmem:[#allocation7 + $0x20] sm:$0xff]
        %v387 = vld [vmem:[#allocation7 + $0x28] sm:$0xff]
        %v388 = vld [vmem:[#allocation7 + $0x30] sm:$0xff]
        %v389 = vld [vmem:[#allocation7 + $0x38] sm:$0xff]
        %v390 = vld [vmem:[#allocation7 + $0x40] sm:$0xff]
        %v391 = vld [vmem:[#allocation7 + $0x48] sm:$0xff]
        %v392 = vld [vmem:[#allocation7 + $0x50] sm:$0xff]
        %v393 = vld [vmem:[#allocation7 + $0x58] sm:$0xff]
        %v394 = vld [vmem:[#allocation7 + $0x60] sm:$0xff]
        %v395 = vld [vmem:[#allocation7 + $0x68] sm:$0xff]
        %v396 = vld [vmem:[#allocation7 + $0x70] sm:$0xff]
        %v397 = vld [vmem:[#allocation7 + $0x78] sm:$0xff]
        %398 = vmatprep.subr.mxu0 0.0
        %399 = vmatpush1.msra.mxu0 %v382
        %400 = vmatprep.subr.mxu0 0.0
        %401 = vmatpush1.msra.mxu0 %v383
        %402 = vmatprep.subr.mxu0 0.0
        %403 = vmatpush1.msra.mxu0 %v384
        %404 = vmatprep.subr.mxu0 0.0
        %405 = vmatpush1.msra.mxu0 %v385
        %406 = vmatprep.subr.mxu0 0.0
        %407 = vmatpush1.msra.mxu0 %v386
        %408 = vmatprep.subr.mxu0 0.0
        %409 = vmatpush1.msra.mxu0 %v387
        %410 = vmatprep.subr.mxu0 0.0
        %411 = vmatpush1.msra.mxu0 %v388
        %412 = vmatprep.subr.mxu0 0.0
        %413 = vmatpush1.msra.mxu0 %v389
        %414 = vmatprep.subr.mxu0 0.0
        %415 = vmatpush1.msra.mxu0 %v390
        %416 = vmatprep.subr.mxu0 0.0
        %417 = vmatpush1.msra.mxu0 %v391
        %418 = vmatprep.subr.mxu0 0.0
        %419 = vmatpush1.msra.mxu0 %v392
        %420 = vmatprep.subr.mxu0 0.0
        %421 = vmatpush1.msra.mxu0 %v393
        %422 = vmatprep.subr.mxu0 0.0
        %423 = vmatpush1.msra.mxu0 %v394
        %424 = vmatprep.subr.mxu0 0.0
        %425 = vmatpush1.msra.mxu0 %v395
        %426 = vmatprep.subr.mxu0 0.0
        %427 = vmatpush1.msra.mxu0 %v396
        %428 = vmatprep.subr.mxu0 0.0
        %429 = vmatpush1.msra.mxu0 %v397
        %430 = vmatprep.subr.mxu0 0.0
        %431 = vmatpush1.msra.mxu0 0.0
        %432 = vmatprep.subr.mxu0 0.0
        %433 = vmatpush1.msra.mxu0 0.0
        %434 = vmatprep.subr.mxu0 0.0
        %435 = vmatpush1.msra.mxu0 0.0
        %436 = vmatprep.subr.mxu0 0.0
        %437 = vmatpush1.msra.mxu0 0.0
        %438 = vmatprep.subr.mxu0 0.0
        %439 = vmatpush1.msra.mxu0 0.0
        %440 = vmatprep.subr.mxu0 0.0
        %441 = vmatpush1.msra.mxu0 0.0
        %442 = vmatprep.subr.mxu0 0.0
        %443 = vmatpush1.msra.mxu0 0.0
        %444 = vmatprep.subr.mxu0 0.0
        %445 = vmatpush1.msra.mxu0 0.0
        %446 = vmatprep.subr.mxu0 0.0
        %447 = vmatpush1.msra.mxu0 0.0
        %448 = vmatprep.subr.mxu0 0.0
        %449 = vmatpush1.msra.mxu0 0.0
        %450 = vmatprep.subr.mxu0 0.0
        %451 = vmatpush1.msra.mxu0 0.0
        %452 = vmatprep.subr.mxu0 0.0
        %453 = vmatpush1.msra.mxu0 0.0
        %454 = vmatprep.subr.mxu0 0.0
        %455 = vmatpush1.msra.mxu0 0.0
        %456 = vmatprep.subr.mxu0 0.0
        %457 = vmatpush1.msra.mxu0 0.0
        %458 = vmatprep.subr.mxu0 0.0
        %459 = vmatpush1.msra.mxu0 0.0
        %460 = vmatprep.subr.mxu0 0.0
        %461 = vmatpush1.msra.mxu0 0.0
        %462 = vmatprep.mubr.f32.mxu0 0.0
        %463 = vmatmul.mubr.f32.gmra.mrb[0].mxu0 %v379
        %v464 = vpop.f32.mrb[0].mxu0
        %v465 = vadd.f32 0.0, %v464
        %v466 = vpop.f32.mrb[0].mxu0
        %467 = vmatprep.mubr.f32.mxu0 0.0
        %468 = vmatmul.mubr.f32.gmra.mrb[0].mxu0 %v381
        %v469 = vpop.f32.mrb[0].mxu0
        %v470 = vadd.f32 0.0, %v469
        %v471 = vpop.f32.mrb[0].mxu0
        %472 = vdwg.mxu0
        %v473 = vmax.f32 %v465, 1e-30
        %v474 = vmax.f32 %v470, 1e-30
        %v475 = vrcp.pop %v473
        %v476 = vmul.f32 %v379, %v475
        %v477 = vrcp.pop %v474
        %v478 = vmul.f32 %v381, %v477
        %479 = vst [vmem:[%s282] sm:$0xff] %v476
        %480 = vst [vmem:[%s282 + $0x8] sm:$0xff] %v478
        %s481 = sand.u32 %s124, 1
        %s482 = scalar_lea.sflag [#allocation4], %s481
        %s483 = sand.u32 %s124, 1
        %s484 = smul.addr %s483, 8
        %s485 = scalar_lea.vmem [#allocation8], %s484
        %s486 = sand.u32 %s150, 1
        %s487 = scalar_lea.sflag [#allocation10], %s486
        %s488 = sand.u32 %s150, 1
        %s489 = smul.addr %s488, 16
        %s490 = scalar_lea.vmem [#allocation9], %s489
        // Predicated region
        $region49: #{tpu_custom_call.1} parent=35 // pred_check
          %p491 = pneg %p134
        $region50: #{tpu_custom_call.1} parent=35 // pred_check_branch
          %493 = sbr.rel (%p491) target = $region52
        $region51: #{tpu_custom_call.1} parent=35 // pred_region
          %s494 = smul.u32 2, %s27
          %s496 = ssub.s32 128, 128
          %497 = vsyncadd %s482, %s496
          %s498 = smul.addr %s494, 64
          %s499 = scalar_lea.hbm %s4, %s498
          %s500 = sshll.u32 %s485, 4
          %s501 = int_to_ptr.vmem [resolvable:$true] %s500
          %506 = dma.vmem_to_hbm [thread:$0]  %s501, 128, %s499, %s482, 64, 64, 4
        $region52: #{tpu_custom_call.1} parent=35 // pred_fallthru
          _
        // Predicated region
        $region53: #{tpu_custom_call.1} parent=35 // pred_check
          %p507 = pneg %p160
        $region54: #{tpu_custom_call.1} parent=35 // pred_check_branch
          %509 = sbr.rel (%p507) target = $region56
        $region55: #{tpu_custom_call.1} parent=35 // pred_region
          %s510 = smul.u32 2, %s27
          %s512 = ssub.s32 256, 256
          %513 = vsyncadd %s487, %s512
          %s514 = smul.addr %s510, 128
          %s515 = scalar_lea.hbm %s5, %s514
          %s516 = sshll.u32 %s490, 4
          %s517 = int_to_ptr.vmem [resolvable:$true] %s516
          %522 = dma.vmem_to_hbm [thread:$0]  %s517, 256, %s515, %s487, 128, 128, 8
        $region56: #{tpu_custom_call.1} parent=35 // pred_fallthru
          _
      $region36: #{tpu_custom_call.1} parent=5 // pred_fallthru
        _
      %p523 = scmp.le.s32.totalorder 2, %s22
      // Predicated region
      $region57: #{tpu_custom_call.1} parent=5 // pred_check
        %p524 = pneg %p523
      $region58: #{tpu_custom_call.1} parent=5 // pred_check_branch
        %526 = sbr.rel (%p524) target = $region60
      $region59: #{tpu_custom_call.1} parent=5 // pred_region
        %s527 = ssub.s32 %s22, 2
        // Predicated region
        $region61: #{tpu_custom_call.1} parent=59 // pred_check
          %p528 = pneg %p140
        $region62: #{tpu_custom_call.1} parent=59 // pred_check_branch
          %530 = sbr.rel (%p528) target = $region64
        $region63: #{tpu_custom_call.1} parent=59 // pred_region
          %s531 = sand.u32 %s125, 1
          %s532 = scalar_lea.sflag [#allocation4], %s531
          %s533 = sand.u32 %s125, 1
          %s534 = smul.addr %s533, 8
          %s535 = scalar_lea.vmem [#allocation8], %s534
          %536 = dma.done %s532, 128
        $region64: #{tpu_custom_call.1} parent=59 // pred_fallthru
          _
        // Predicated region
        $region65: #{tpu_custom_call.1} parent=59 // pred_check
          %p537 = pneg %p166
        $region66: #{tpu_custom_call.1} parent=59 // pred_check_branch
          %539 = sbr.rel (%p537) target = $region68
        $region67: #{tpu_custom_call.1} parent=59 // pred_region
          %s540 = sand.u32 %s151, 1
          %s541 = scalar_lea.sflag [#allocation10], %s540
          %s542 = sand.u32 %s151, 1
          %s543 = smul.addr %s542, 16
          %s544 = scalar_lea.vmem [#allocation9], %s543
          %545 = dma.done %s541, 256
        $region68: #{tpu_custom_call.1} parent=59 // pred_fallthru
          _
      $region60: #{tpu_custom_call.1} parent=5 // pred_fallthru
        _
    $region6: #{tpu_custom_call.1} parent=1 // loop_footer
      %s26 = sadd.s32 1, %s22
    $region7: #{tpu_custom_call.1} parent=1 // loop_footer_branch
      %21 = sbr.rel target = $region3
    $region8: #{tpu_custom_call.1} parent=1 // loop_exit
      _
    %546 = vsyncpa [#allocation3], 1
    %s547 = scalar_lea.sflag [#allocation3], 1
    %548 = vsyncpa %s547, 1
    %549 = vsyncpa [#allocation6], 1
    %550 = vsyncpa [#allocation4], 1
    %s551 = scalar_lea.sflag [#allocation4], 1
    %552 = vsyncpa %s551, 1
    %553 = vsyncpa [#allocation10], 1
    %s554 = scalar_lea.sflag [#allocation10], 1
    %555 = vsyncpa %s554, 1

</llo_original>
